<compile_context>
chip_gen: v7x
topology: tpu7x:2x2x1
jax: 0.10.0
libtpu: 0.0.40
codegen_flags: <defaults>
</compile_context>

<pallas_src>
import functools

import jax
import jax.numpy as jnp
from jax.experimental import pallas as pl
from jax.experimental.pallas import tpu as pltpu


_TARGET_OUT_BYTES = 2 * 1024 * 1024     # ~2 MiB of output per grid step
_VMEM_LIMIT_BYTES = 32 * 1024 * 1024    # safe on v5e/v6e/v7x; >> our footprint
_MATMUL_CHUNK = 128                     # K-chunk for the column-replication matmul


def _divisors(n):
    ds = set()
    i = 1
    while i * i <= n:
        if n % i == 0:
            ds.add(i)
            ds.add(n // i)
        i += 1
    return sorted(ds)


def _choose_tiles(n_rows, w, x_scale, y_scale, itemsize, target_out_bytes):
    """Pick (row_tile, w_tile) targeting ~target_out_bytes of output per step."""
    # Sublane quantum for the input block's second-minor (rows) dim.
    sub = {4: 8, 2: 16, 1: 32}.get(int(itemsize), 8)

    def out_bytes(rt, wt):
        return rt * y_scale * wt * x_scale * itemsize

    # w tile: full w unless even `sub` rows of output exceed the budget; then
    # the largest 128-multiple divisor of w that fits (keeps blocks lane
    # aligned).  Fall back to full w (full dims are always legal).
    w_tile = w
    if out_bytes(sub, w) > target_out_bytes:
        for cand in range(128, w + 1, 128):
            if w % cand == 0 and out_bytes(sub, cand) <= target_out_bytes:
                w_tile = cand

    # row tile: the largest divisor of n_rows that is a multiple of the
    # sublane quantum and fits; else the smallest such divisor; else all rows.
    divs = [d for d in _divisors(n_rows) if d % sub == 0]
    if divs:
        fitting = [d for d in divs if out_bytes(d, w_tile) <= target_out_bytes]
        r_tile = max(fitting) if fitting else min(divs)
    else:
        r_tile = n_rows

    # Prefer >= 2 grid steps so both v7x TensorCores get work.
    if (n_rows // r_tile) * (w // w_tile) < 2:
        smaller = [d for d in divs if d < r_tile]
        if smaller:
            r_tile = max(smaller)
    return r_tile, w_tile


def _rep_matrix(n_in, x_scale, dtype):
    """(n_in, n_in*x_scale) matrix R with R[i, j] = 1 iff j // x_scale == i."""
    n_out = n_in * x_scale
    rows = jax.lax.broadcasted_iota(jnp.int32, (n_in, n_out), 0)
    cols = jax.lax.broadcasted_iota(jnp.int32, (n_in, n_out), 1)
    sel = (cols >= rows * x_scale) & (cols < rows * x_scale + x_scale)
    return jnp.where(sel, 1.0, 0.0).astype(dtype)


def _split_exact_bf16(x_f32):
    """Split f32 into three bf16 pieces with hi + mid + lo == x exactly."""
    hi = x_f32.astype(jnp.bfloat16)
    r1 = x_f32 - hi.astype(jnp.float32)
    mid = r1.astype(jnp.bfloat16)
    lo = (r1 - mid.astype(jnp.float32)).astype(jnp.bfloat16)
    return hi, mid, lo


def _stretch2d_kernel(x_ref, o_ref, *, x_scale, y_scale):
    x = x_ref[...]                          # (rt, wt) block of input rows
    rt, wt = x.shape
    out_dtype = o_ref.dtype

    def store(col0, vals):                  # vals: (rt, nc), already out_dtype
        nc = vals.shape[-1]
        if y_scale > 1:
            vals = jnp.broadcast_to(vals[:, None, :], (rt, y_scale, nc))
            o_ref[:, :, col0:col0 + nc] = vals
        else:
            o_ref[:, col0:col0 + nc] = vals

    if x_scale == 1:
        store(0, x.astype(out_dtype))
        return

    # Column replication out[:, j] = x[:, j // x_scale] as a matmul with a 0/1
    # replication matrix (MXU slack is free in this bandwidth-bound kernel;
    # the store stays lane-dense).  float32 is split into three exact bf16
    # pieces so the copy is bit-exact irrespective of MXU matmul precision.
    # NOTE: non-finite values (inf/nan) are not transported bit-exactly on
    # this path; WaveRNN features are always finite.
    if x.dtype == jnp.bfloat16:
        parts = (x,)
    else:
        parts = _split_exact_bf16(x.astype(jnp.float32))

    full_cw = min(_MATMUL_CHUNK, wt)
    r_full = _rep_matrix(full_cw, x_scale, jnp.bfloat16)
    for c0 in range(0, wt, _MATMUL_CHUNK):
        cw = min(_MATMUL_CHUNK, wt - c0)
        r_mat = r_full if cw == full_cw else _rep_matrix(cw, x_scale, jnp.bfloat16)
        acc = None
        for p in parts:
            term = jnp.dot(p[:, c0:c0 + cw], r_mat,
                           preferred_element_type=jnp.float32)
            acc = term if acc is None else acc + term
        store(c0 * x_scale, acc.astype(out_dtype))


def _stretch2d_broadcast_kernel(x_ref, o_ref, *, x_scale, y_scale):
    # Fallback for dtypes the MXU path does not transport exactly (ints/bool):
    # pure broadcast store through a (rows, y_scale, w, x_scale) output view.
    x = x_ref[...]                          # (rt, wt)
    rt, wt = x.shape
    o_ref[...] = jnp.broadcast_to(x[:, None, :, None], (rt, y_scale, wt, x_scale))


def stretch2d(x: jax.Array, x_scale: int, y_scale: int) -> jax.Array:
    """Equivalent of Stretch2d(x_scale, y_scale).forward(x) for NCHW x."""
    if x.ndim != 4:
        raise ValueError(f"expected NCHW input, got shape {x.shape}")
    x_scale = int(x_scale)
    y_scale = int(y_scale)
    b, c, h, w = x.shape
    ho, wo = h * y_scale, w * x_scale
    n_rows = b * c * h
    itemsize = jnp.dtype(x.dtype).itemsize

    # Lane-dense MXU path for floats (and the trivial x_scale == 1 case);
    # lane-sparse pure-broadcast path otherwise.
    lane_dense = x_scale == 1 or jnp.issubdtype(x.dtype, jnp.inexact)
    target = _TARGET_OUT_BYTES
    if not lane_dense:
        # The (w, x_scale) view pads the lane dim to 128 in VMEM; shrink the
        # per-step budget so the padded block still fits comfortably.
        target = max(_TARGET_OUT_BYTES * x_scale // 128, 64 * 1024)

    r_tile, w_tile = _choose_tiles(n_rows, w, x_scale, y_scale, itemsize, target)
    grid = (n_rows // r_tile, w // w_tile)

    x_flat = x.reshape(n_rows, w)
    in_spec = pl.BlockSpec((r_tile, w_tile), lambda i, j: (i, j))

    if lane_dense:
        kernel = functools.partial(_stretch2d_kernel,
                                   x_scale=x_scale, y_scale=y_scale)
        if y_scale > 1:
            out_shape = jax.ShapeDtypeStruct((n_rows, y_scale, wo), x.dtype)
            out_spec = pl.BlockSpec((r_tile, y_scale, w_tile * x_scale),
                                    lambda i, j: (i, 0, j))
        else:
            out_shape = jax.ShapeDtypeStruct((n_rows, wo), x.dtype)
            out_spec = pl.BlockSpec((r_tile, w_tile * x_scale),
                                    lambda i, j: (i, j))
    else:
        # TODO(synk): integer/bool inputs use the lane-sparse broadcast path.
        kernel = functools.partial(_stretch2d_broadcast_kernel,
                                   x_scale=x_scale, y_scale=y_scale)
        out_shape = jax.ShapeDtypeStruct((n_rows, y_scale, w, x_scale), x.dtype)
        out_spec = pl.BlockSpec((r_tile, y_scale, w_tile, x_scale),
                                lambda i, j: (i, 0, j, 0))

    flops = 0
    if lane_dense and x_scale > 1:
        n_passes = 1 if x.dtype == jnp.bfloat16 else 3
        flops = 2 * n_passes * n_rows * wo * min(_MATMUL_CHUNK, w_tile)
    bytes_accessed = (1 + x_scale * y_scale) * x.size * itemsize

    out = pl.pallas_call(
        kernel,
        out_shape=out_shape,
        grid=grid,
        in_specs=[in_spec],
        out_specs=out_spec,
        compiler_params=pltpu.CompilerParams(
            dimension_semantics=("parallel", "parallel"),
            vmem_limit_bytes=_VMEM_LIMIT_BYTES,
        ),
        cost_estimate=pl.CostEstimate(
            flops=int(flops), transcendentals=0,
            bytes_accessed=int(bytes_accessed)),
    )(x_flat)

    return out.reshape(b, c, ho, wo)


def _reference_stretch2d(x, x_scale, y_scale):
    # Pure-JAX reference matching the PyTorch semantics exactly.
    b, c, h, w = x.shape
    x = x[:, :, :, None, :, None]                       # (b, c, h, 1, w, 1)
    x = jnp.tile(x, (1, 1, 1, y_scale, 1, x_scale))     # (b, c, h, ys, w, xs)
    return x.reshape(b, c, h * y_scale, w * x_scale)


if __name__ == "__main__":
    key = jax.random.PRNGKey(0)
    k0, k1 = jax.random.split(key)

    def check(xv, xs, ys):
        out = jax.block_until_ready(stretch2d(xv, xs, ys))
        ref = _reference_stretch2d(xv, xs, ys)
        bb, cc, hh, ww = xv.shape
        assert out.shape == (bb, cc, hh * ys, ww * xs), (out.shape, xs, ys)
        assert out.dtype == xv.dtype
        assert jnp.array_equal(out, ref), (
            f"mismatch vs reference: dtype={xv.dtype} scales=({xs},{ys})")

    # Main example input (matches the module's NCHW expectation).
    x32 = jax.random.normal(k0, (2, 4, 16, 16), dtype=jnp.float32)
    for xs, ys in ((2, 3), (5, 1), (1, 4), (1, 1)):
        check(x32, xs, ys)

    # bf16 path (single exact bf16 matmul pass).
    x16 = jax.random.normal(k1, (2, 4, 16, 16), dtype=jnp.float32).astype(jnp.bfloat16)
    check(x16, 2, 2)

    # Odd width exercising the chunked replication matmul and uneven tiles.
    xodd = jax.random.normal(k0, (1, 3, 8, 200), dtype=jnp.float32)
    check(xodd, 3, 2)

    print("KERNEL_OK")
</pallas_src>

<mosaic_0001>
module attributes {stable_mosaic.version = 11 : i64} {
  func.func @_stretch2d_kernel(%arg0: i32, %arg1: i32, %arg2: memref<64x16xf32, #tpu.memory_space<vmem>>, %arg3: memref<64x3x32xf32, #tpu.memory_space<vmem>>) attributes {dimension_semantics = [#tpu.dimension_semantics<parallel>, #tpu.dimension_semantics<parallel>], iteration_bounds = array<i64: 2, 1>, scalar_prefetch = 0 : i64, scratch_operands = 0 : i64, tpu.core_type = #tpu.core_type<tc>, window_params = [{transform_indices = @transform_0, window_bounds = array<i64: 64, 16>}, {transform_indices = @transform_1, window_bounds = array<i64: 64, 3, 32>}]} {
    %c0 = arith.constant 0 : index
    %c0_0 = arith.constant 0 : index
    %0 = vector.load %arg2[%c0, %c0_0] : memref<64x16xf32, #tpu.memory_space<vmem>>, vector<64x16xf32>
    %1 = arith.truncf %0 : vector<64x16xf32> to vector<64x16xbf16>
    %2 = arith.extf %1 : vector<64x16xbf16> to vector<64x16xf32>
    %3 = arith.subf %0, %2 : vector<64x16xf32>
    %4 = arith.truncf %3 : vector<64x16xf32> to vector<64x16xbf16>
    %5 = arith.extf %4 : vector<64x16xbf16> to vector<64x16xf32>
    %6 = arith.subf %3, %5 : vector<64x16xf32>
    %7 = arith.truncf %6 : vector<64x16xf32> to vector<64x16xbf16>
    %8 = tpu.iota {dimensions = array<i32: 0>} : vector<16x32xi32>
    %9 = tpu.iota {dimensions = array<i32: 1>} : vector<16x32xi32>
    %c2_i32 = arith.constant 2 : i32
    %10 = vector.broadcast %c2_i32 : i32 to vector<16x32xi32>
    %11 = arith.muli %8, %10 : vector<16x32xi32>
    %12 = arith.cmpi sge, %9, %11 : vector<16x32xi32>
    %c2_i32_1 = arith.constant 2 : i32
    %13 = vector.broadcast %c2_i32_1 : i32 to vector<16x32xi32>
    %14 = arith.muli %8, %13 : vector<16x32xi32>
    %c2_i32_2 = arith.constant 2 : i32
    %15 = vector.broadcast %c2_i32_2 : i32 to vector<16x32xi32>
    %16 = arith.addi %14, %15 : vector<16x32xi32>
    %17 = arith.cmpi slt, %9, %16 : vector<16x32xi32>
    %18 = arith.andi %12, %17 : vector<16x32xi1>
    %cst = arith.constant 1.000000e+00 : f32
    %cst_3 = arith.constant 0.000000e+00 : f32
    %19 = vector.broadcast %cst : f32 to vector<16x32xf32>
    %20 = vector.broadcast %cst_3 : f32 to vector<16x32xf32>
    %21 = arith.select %18, %19, %20 : vector<16x32xi1>, vector<16x32xf32>
    %22 = arith.truncf %21 : vector<16x32xf32> to vector<16x32xbf16>
    %cst_4 = arith.constant dense<0.000000e+00> : vector<64x32xf32>
    %23 = tpu.matmul %1, %22, %cst_4 {dimension_numbers = #tpu.dot_dimension_numbers<[1], [0], [0], [1], [0, 0, 1, 1], [], []>} : vector<64x16xbf16>, vector<16x32xbf16>, vector<64x32xf32> -> vector<64x32xf32>
    %cst_5 = arith.constant dense<0.000000e+00> : vector<64x32xf32>
    %24 = tpu.matmul %4, %22, %cst_5 {dimension_numbers = #tpu.dot_dimension_numbers<[1], [0], [0], [1], [0, 0, 1, 1], [], []>} : vector<64x16xbf16>, vector<16x32xbf16>, vector<64x32xf32> -> vector<64x32xf32>
    %25 = arith.addf %23, %24 : vector<64x32xf32>
    %cst_6 = arith.constant dense<0.000000e+00> : vector<64x32xf32>
    %26 = tpu.matmul %7, %22, %cst_6 {dimension_numbers = #tpu.dot_dimension_numbers<[1], [0], [0], [1], [0, 0, 1, 1], [], []>} : vector<64x16xbf16>, vector<16x32xbf16>, vector<64x32xf32> -> vector<64x32xf32>
    %27 = arith.addf %25, %26 : vector<64x32xf32>
    %28 = vector.shape_cast %27 : vector<64x32xf32> to vector<64x1x32xf32>
    %29 = vector.shape_cast %28 : vector<64x1x32xf32> to vector<64x1x32xf32>
    %30 = vector.broadcast %29 : vector<64x1x32xf32> to vector<64x3x32xf32>
    %c0_7 = arith.constant 0 : index
    %c0_8 = arith.constant 0 : index
    %c0_9 = arith.constant 0 : index
    %31 = vector.load %arg3[%c0_7, %c0_8, %c0_9] : memref<64x3x32xf32, #tpu.memory_space<vmem>>, vector<64x3x32xf32>
    tpu.vector_store %arg3[%c0_7, %c0_8, %c0_9], %30 {strides = array<i32>} : memref<64x3x32xf32, #tpu.memory_space<vmem>>, vector<64x3x32xf32>,
    return
  }
  func.func @transform_0(%arg0: i32, %arg1: i32) -> (i32, i32) {
    %c0_i32 = arith.constant 0 : i32
    return %arg0, %arg1 : i32, i32
  }
  func.func @transform_1(%arg0: i32, %arg1: i32) -> (i32, i32, i32) {
    %c0_i32 = arith.constant 0 : i32
    %c0_i32_0 = arith.constant 0 : i32
    return %arg0, %c0_i32, %arg1 : i32, i32, i32
  }
}

</mosaic_0001>

<llo_original>
// kernel: tpu_custom_call.1
$region0: #{tpu_custom_call.1}
  #allocation0 [shape = 'u32[]', space=smem, size = 0x4, offset = 0x4, fixed_abs, tag = 'smem constant byte address 0x4 - core index']
  #allocation1 [shape = 'u32[144,128]{1,0:T(1,128)}', space=vmem, size = 0x12000, scoped, tag = 'internal scratch']
  %s0 = inlined_call_operand.vmem [shape: f32[128,16], index: 0, kind: input, shape index: {}]
  %s1 = inlined_call_operand.vmem [shape: f32[128,3,32], index: 1, kind: output, shape index: {}]
  %s2 = sld [smem:[#allocation0]]
  $region37: #{tpu_custom_call.1} parent=0
    _
  %s4 = ssub.s32 1, %s2
  %s5 = scalar_select 0, %s4, %s2
  loop: start=0, step=1, limit=4
  $region2: #{tpu_custom_call.1} parent=0 // loop_pre_header
    _
  $region3: #{tpu_custom_call.1} parent=0 // loop_header
    %s7 = sphi 0, %s11
    %p8 = scmp.ge.s32.totalorder %s7, 4
    %s14 = sphi 0, %s26
    %s15 = sphi 0, %s22
    %s16 = sphi 0, %s14
    %s17 = sphi 0, %s15
    %s18 = sphi 0, %s16
    %s19 = sphi 0, %s17
    %s31 = sphi 0, %s33
    %s34 = sphi 0, %s31
    %s35 = sphi 0, %s34
    %s51 = sphi 0, %s35
    %s59 = sphi 0, %s61
    %s62 = sphi 0, %s59
    %s63 = sphi 0, %s62
    %s79 = sphi 0, %s63
  $region4: #{tpu_custom_call.1} parent=0 // loop_header_branch
    %10 = sbr.rel (%p8) target = $region8
  $region5: #{tpu_custom_call.1} parent=0 // loop_body
    %s12 = ssub.s32 %s7, 1
    %s13 = ssub.s32 %s7, 2
    %s20 = sadd.s32 1, %s15
    %p21 = scmp.ge.s32.totalorder %s20, 1
    %s22 = scalar_select %p21, 0, %s20
    %s23 = sadd.s32 1, %s14
    %s24 = scalar_select %p21, %s23, %s14
    %p25 = scmp.ge.s32.totalorder %s24, 2
    %s26 = scalar_select %p25, 0, %s24
    %s27 = ssub.s32 %s14, %s26
    %s28 = ssub.s32 %s15, %s22
    %s29 = sor.u32 %s27, %s28
    %p30 = scmp.eq.s32.totalorder %s29, 0
    %s32 = sadd.s32 %s31, 1
    %s33 = scalar_select %p30, %s31, %s32
    %p36 = pneg %p30
    %p37 = scmp.eq.s32.totalorder %s7, 1
    %p38 = por %p36, %p37
    %p39 = scmp.ne.s32.totalorder %s31, %s34
    %p40 = scmp.eq.s32.totalorder %s7, 0
    %p41 = por %p39, %p40
    %p42 = scmp.ne.s32.totalorder %s31, %s34
    %p43 = scmp.eq.s32.totalorder %s12, 1
    %p44 = por %p42, %p43
    %p45 = scmp.ne.s32.totalorder %s34, %s35
    %p46 = scmp.eq.s32.totalorder %s12, 0
    %p47 = por %p45, %p46
    %p48 = scmp.ne.s32.totalorder %s34, %s35
    %p49 = scmp.eq.s32.totalorder %s13, 1
    %p50 = por %p48, %p49
    %p52 = scmp.ne.s32.totalorder %s35, %s51
    %p53 = scmp.eq.s32.totalorder %s13, 0
    %p54 = por %p52, %p53
    %s55 = ssub.s32 %s14, %s26
    %s56 = ssub.s32 %s15, %s22
    %s57 = sor.u32 %s55, %s56
    %p58 = scmp.eq.s32.totalorder %s57, 0
    %s60 = sadd.s32 %s59, 1
    %s61 = scalar_select %p58, %s59, %s60
    %p64 = pneg %p58
    %p65 = scmp.eq.s32.totalorder %s7, 1
    %p66 = por %p64, %p65
    %p67 = scmp.ne.s32.totalorder %s59, %s62
    %p68 = scmp.eq.s32.totalorder %s7, 0
    %p69 = por %p67, %p68
    %p70 = scmp.ne.s32.totalorder %s59, %s62
    %p71 = scmp.eq.s32.totalorder %s12, 1
    %p72 = por %p70, %p71
    %p73 = scmp.ne.s32.totalorder %s62, %s63
    %p74 = scmp.eq.s32.totalorder %s12, 0
    %p75 = por %p73, %p74
    %p76 = scmp.ne.s32.totalorder %s62, %s63
    %p77 = scmp.eq.s32.totalorder %s13, 1
    %p78 = por %p76, %p77
    %p80 = scmp.ne.s32.totalorder %s63, %s79
    %p81 = scmp.eq.s32.totalorder %s13, 0
    %p82 = por %p80, %p81
    %p83 = scmp.le.s32.totalorder 1, %s7
    %p84 = scmp.lt.s32.totalorder %s7, 3
    %p85 = pnand %p83, %p84
    %p86 = pneg %p85
    // Predicated region
    $region9: #{tpu_custom_call.1} parent=5 // pred_check
      _
    $region10: #{tpu_custom_call.1} parent=5 // pred_check_branch
      %88 = sbr.rel (%p85) target = $region12
    $region11: #{tpu_custom_call.1} parent=5 // pred_region
      %s89 = ssub.s32 %s7, 1
    $region12: #{tpu_custom_call.1} parent=5 // pred_fallthru
      _
    %p90 = scmp.lt.s32.totalorder %s7, 2
    // Predicated region
    $region13: #{tpu_custom_call.1} parent=5 // pred_check
      %p91 = pneg %p90
    $region14: #{tpu_custom_call.1} parent=5 // pred_check_branch
      %93 = sbr.rel (%p91) target = $region16
    $region15: #{tpu_custom_call.1} parent=5 // pred_region
      // Predicated region
      $region17: #{tpu_custom_call.1} parent=15 // pred_check
        %p94 = pneg %p41
      $region18: #{tpu_custom_call.1} parent=15 // pred_check_branch
        %96 = sbr.rel (%p94) target = $region20
      $region19: #{tpu_custom_call.1} parent=15 // pred_region
        %s97 = smul.u32 8, %s14
        %p98 = scmp.lt.s32.totalorder %s97, 15
        %s99 = scalar_select %p98, %s97, 15
        %p100 = scmp.lt.s32.totalorder %s15, 0
        %s101 = scalar_select %p100, %s15, 0
        %s102 = sadd.s32 %s101, %s99
        %s103 = smul.addr %s102, 8
        %s104 = scalar_lea.vmem %s0, %s103
        %s105 = smul.u32 8, %s14
      $region20: #{tpu_custom_call.1} parent=15 // pred_fallthru
        _
    $region16: #{tpu_custom_call.1} parent=5 // pred_fallthru
      _
    %p106 = scmp.le.s32.totalorder 1, %s7
    %p107 = scmp.lt.s32.totalorder %s7, 3
    %p108 = pnand %p106, %p107
    %p109 = pneg %p108
    // Predicated region
    $region21: #{tpu_custom_call.1} parent=5 // pred_check
      _
    $region22: #{tpu_custom_call.1} parent=5 // pred_check_branch
      %111 = sbr.rel (%p108) target = $region24
    $region23: #{tpu_custom_call.1} parent=5 // pred_region
      %s112 = ssub.s32 %s7, 1
      %s113 = smul.u32 8, %s16
      %p114 = scmp.lt.s32.totalorder %s113, 15
      %s115 = scalar_select %p114, %s113, 15
      %p116 = scmp.lt.s32.totalorder %s17, 0
      %s117 = scalar_select %p116, %s17, 0
      %s118 = sadd.s32 %s117, %s115
      %s119 = smul.addr %s118, 8
      %s120 = scalar_lea.vmem %s0, %s119
      %p121 = pneg %p47
      %p122 = pneg %p44
      %p123 = pneg %p75
      %p124 = pneg %p72
      %s125 = smul.u32 64, %s16
      %p126 = scmp.lt.s32.totalorder %s125, 127
      %s127 = scalar_select %p126, %s125, 127
      %p128 = scmp.lt.s32.totalorder %s17, 0
      %s129 = scalar_select %p128, %s17, 0
      %s130 = sadd.s32 %s129, %s127
      %s131 = smul.addr %s130, 4
      %s132 = scalar_lea.vmem %s1, %s131
      %s133 = smul.u32 8, %s16
      %p134 = scmp.lt.s32.totalorder %s133, 15
      %s135 = scalar_select %p134, %s133, 15
      %p136 = scmp.lt.s32.totalorder %s17, 0
      %s137 = scalar_select %p136, %s17, 0
      %s138 = sadd.s32 %s137, %s135
      %s139 = smul.addr %s138, 8
      %s140 = scalar_lea.vmem %s0, %s139
      %s141 = smul.u32 8, %s16
      %s142 = smul.u32 64, %s16
      %p143 = scmp.lt.s32.totalorder %s142, 127
      %s144 = scalar_select %p143, %s142, 127
      %p145 = scmp.lt.s32.totalorder %s17, 0
      %s146 = scalar_select %p145, %s17, 0
      %s147 = sadd.s32 %s146, %s144
      %s148 = smul.addr %s147, 4
      %s149 = scalar_lea.vmem %s1, %s148
      %s150 = smul.u32 64, %s16
      %v152 = vld [vmem:[%s140] sm:$0xff]
      %v153 = vld [vmem:[%s140 + $0x8] sm:$0xff]
      %v154 = vld [vmem:[%s140 + $0x10] sm:$0xff]
      %v155 = vld [vmem:[%s140 + $0x18] sm:$0xff]
      %v156 = vld [vmem:[%s140 + $0x20] sm:$0xff]
      %v157 = vld [vmem:[%s140 + $0x28] sm:$0xff]
      %v158 = vld [vmem:[%s140 + $0x30] sm:$0xff]
      %v159 = vld [vmem:[%s140 + $0x38] sm:$0xff]
      %v160 = vpack.c.bf16 %v153, %v152
      %v161 = vpack.c.bf16 %v155, %v154
      %v162 = vpack.c.bf16 %v157, %v156
      %v163 = vpack.c.bf16 %v159, %v158
      %v164 = vunpack.c.l.bf16 %v160
      %v165 = vunpack.c.h.bf16 %v160
      %v166 = vunpack.c.l.bf16 %v161
      %v167 = vunpack.c.h.bf16 %v161
      %v168 = vunpack.c.l.bf16 %v162
      %v169 = vunpack.c.h.bf16 %v162
      %v170 = vunpack.c.l.bf16 %v163
      %v171 = vunpack.c.h.bf16 %v163
      %v172 = vsub.f32 %v152, %v164
      %v173 = vsub.f32 %v153, %v165
      %v174 = vsub.f32 %v154, %v166
      %v175 = vsub.f32 %v155, %v167
      %v176 = vsub.f32 %v156, %v168
      %v177 = vsub.f32 %v157, %v169
      %v178 = vsub.f32 %v158, %v170
      %v179 = vsub.f32 %v159, %v171
      %v180 = vpack.c.bf16 %v173, %v172
      %v181 = vpack.c.bf16 %v175, %v174
      %v182 = vpack.c.bf16 %v177, %v176
      %v183 = vpack.c.bf16 %v179, %v178
      %v184 = vunpack.c.l.bf16 %v180
      %v185 = vunpack.c.h.bf16 %v180
      %v186 = vunpack.c.l.bf16 %v181
      %v187 = vunpack.c.h.bf16 %v181
      %v188 = vunpack.c.l.bf16 %v182
      %v189 = vunpack.c.h.bf16 %v182
      %v190 = vunpack.c.l.bf16 %v183
      %v191 = vunpack.c.h.bf16 %v183
      %v192 = vsub.f32 %v172, %v184
      %v193 = vsub.f32 %v173, %v185
      %v194 = vsub.f32 %v174, %v186
      %v195 = vsub.f32 %v175, %v187
      %v196 = vsub.f32 %v176, %v188
      %v197 = vsub.f32 %v177, %v189
      %v198 = vsub.f32 %v178, %v190
      %v199 = vsub.f32 %v179, %v191
      %v200 = vpack.c.bf16 %v193, %v192
      %v201 = vpack.c.bf16 %v195, %v194
      %v202 = vpack.c.bf16 %v197, %v196
      %v203 = vpack.c.bf16 %v199, %v198
      %v204 = vlaneseq
      %v205 = vshrl.u32 %v204, 7
      %v206 = vadd.s32 %v205, 8
      %v207 = vlaneseq
      %v208 = vand.u32 %v207, 127
      %v209 = vmul.u32 %v205, 2
      %v210 = vmul.u32 %v206, 2
      %vm211 = vcmp.ge.s32.totalorder %v208, %v209
      %vm212 = vcmp.ge.s32.totalorder %v208, %v210
      %v213 = vadd.s32 %v209, 2
      %v214 = vadd.s32 %v210, 2
      %vm215 = vcmp.lt.s32.totalorder %v208, %v213
      %vm216 = vcmp.lt.s32.totalorder %v208, %v214
      %vm217 = vmand %vm211, %vm215
      %vm218 = vmand %vm212, %vm216
      %v219 = vsel %vm217, 1.0, 0.0
      %v220 = vsel %vm218, 1.0, 0.0
      %v221 = vpack.c.bf16 %v220, %v219
      %vm222 = vcmask 130048
      %v224 = vsel %vm222, %v180, 0
      %v227 = vsel %vm222, %v181, 0
      %v230 = vsel %vm222, %v182, 0
      %v233 = vsel %vm222, %v183, 0
      %235 = vmatprep.subr.bf16.mxu0 0
      %236 = vmatpush1.bf16.msra.mxu0 %v221
      %237 = vmatprep.subr.bf16.mxu0 0
      %238 = vmatpush1.bf16.msra.mxu0 0
      %239 = vmatprep.subr.bf16.mxu0 0
      %240 = vmatpush1.bf16.msra.mxu0 0
      %241 = vmatprep.subr.bf16.mxu0 0
      %242 = vmatpush1.bf16.msra.mxu0 0
      %243 = vmatprep.subr.bf16.mxu0 0
      %244 = vmatpush1.bf16.msra.mxu0 0
      %245 = vmatprep.subr.bf16.mxu0 0
      %246 = vmatpush1.bf16.msra.mxu0 0
      %247 = vmatprep.subr.bf16.mxu0 0
      %248 = vmatpush1.bf16.msra.mxu0 0
      %249 = vmatprep.subr.bf16.mxu0 0
      %250 = vmatpush1.bf16.msra.mxu0 0
      %251 = vmatprep.subr.bf16.mxu0 0
      %252 = vmatpush1.bf16.msra.mxu0 0
      %253 = vmatprep.subr.bf16.mxu0 0
      %254 = vmatpush1.bf16.msra.mxu0 0
      %255 = vmatprep.subr.bf16.mxu0 0
      %256 = vmatpush1.bf16.msra.mxu0 0
      %257 = vmatprep.subr.bf16.mxu0 0
      %258 = vmatpush1.bf16.msra.mxu0 0
      %259 = vmatprep.subr.bf16.mxu0 0
      %260 = vmatpush1.bf16.msra.mxu0 0
      %261 = vmatprep.subr.bf16.mxu0 0
      %262 = vmatpush1.bf16.msra.mxu0 0
      %263 = vmatprep.subr.bf16.mxu0 0
      %264 = vmatpush1.bf16.msra.mxu0 0
      %265 = vmatprep.subr.bf16.mxu0 0
      %266 = vmatpush1.bf16.msra.mxu0 0
      %267 = vmatprep.mubr.bf16.mxu0 0
      %268 = vmatmul.mubr.bf16.gmra.mrb[0].mxu0 %v224
      %v269 = vpop.f32.mrb[0].mxu0
      %v270 = vadd.f32 0.0, %v269
      %v271 = vpop.f32.mrb[0].mxu0
      %v272 = vpop.f32.mrb[0].mxu0
      %v273 = vadd.f32 0.0, %v272
      %v274 = vpop.f32.mrb[0].mxu0
      %275 = vmatprep.mubr.bf16.mxu0 0
      %276 = vmatmul.mubr.bf16.gmra.mrb[0].mxu0 %v227
      %v277 = vpop.f32.mrb[0].mxu0
      %v278 = vadd.f32 0.0, %v277
      %v279 = vpop.f32.mrb[0].mxu0
      %v280 = vpop.f32.mrb[0].mxu0
      %v281 = vadd.f32 0.0, %v280
      %v282 = vpop.f32.mrb[0].mxu0
      %283 = vmatprep.mubr.bf16.mxu0 0
      %284 = vmatmul.mubr.bf16.gmra.mrb[0].mxu0 %v230
      %v285 = vpop.f32.mrb[0].mxu0
      %v286 = vadd.f32 0.0, %v285
      %v287 = vpop.f32.mrb[0].mxu0
      %v288 = vpop.f32.mrb[0].mxu0
      %v289 = vadd.f32 0.0, %v288
      %v290 = vpop.f32.mrb[0].mxu0
      %291 = vmatprep.mubr.bf16.mxu0 0
      %292 = vmatmul.mubr.bf16.gmra.mrb[0].mxu0 %v233
      %v293 = vpop.f32.mrb[0].mxu0
      %v294 = vadd.f32 0.0, %v293
      %v295 = vpop.f32.mrb[0].mxu0
      %v296 = vpop.f32.mrb[0].mxu0
      %v297 = vadd.f32 0.0, %v296
      %v298 = vpop.f32.mrb[0].mxu0
      %299 = vdwg.mxu0
      %v301 = vsel %vm222, %v160, 0
      %v304 = vsel %vm222, %v161, 0
      %v307 = vsel %vm222, %v162, 0
      %v310 = vsel %vm222, %v163, 0
      %312 = vmatprep.subr.bf16.mxu0 0
      %313 = vmatpush1.bf16.msra.mxu0 %v221
      %314 = vmatprep.subr.bf16.mxu0 0
      %315 = vmatpush1.bf16.msra.mxu0 0
      %316 = vmatprep.subr.bf16.mxu0 0
      %317 = vmatpush1.bf16.msra.mxu0 0
      %318 = vmatprep.subr.bf16.mxu0 0
      %319 = vmatpush1.bf16.msra.mxu0 0
      %320 = vmatprep.subr.bf16.mxu0 0
      %321 = vmatpush1.bf16.msra.mxu0 0
      %322 = vmatprep.subr.bf16.mxu0 0
      %323 = vmatpush1.bf16.msra.mxu0 0
      %324 = vmatprep.subr.bf16.mxu0 0
      %325 = vmatpush1.bf16.msra.mxu0 0
      %326 = vmatprep.subr.bf16.mxu0 0
      %327 = vmatpush1.bf16.msra.mxu0 0
      %328 = vmatprep.subr.bf16.mxu0 0
      %329 = vmatpush1.bf16.msra.mxu0 0
      %330 = vmatprep.subr.bf16.mxu0 0
      %331 = vmatpush1.bf16.msra.mxu0 0
      %332 = vmatprep.subr.bf16.mxu0 0
      %333 = vmatpush1.bf16.msra.mxu0 0
      %334 = vmatprep.subr.bf16.mxu0 0
      %335 = vmatpush1.bf16.msra.mxu0 0
      %336 = vmatprep.subr.bf16.mxu0 0
      %337 = vmatpush1.bf16.msra.mxu0 0
      %338 = vmatprep.subr.bf16.mxu0 0
      %339 = vmatpush1.bf16.msra.mxu0 0
      %340 = vmatprep.subr.bf16.mxu0 0
      %341 = vmatpush1.bf16.msra.mxu0 0
      %342 = vmatprep.subr.bf16.mxu0 0
      %343 = vmatpush1.bf16.msra.mxu0 0
      %344 = vmatprep.mubr.bf16.mxu0 0
      %345 = vmatmul.mubr.bf16.gmra.mrb[0].mxu0 %v301
      %v346 = vpop.f32.mrb[0].mxu0
      %v347 = vadd.f32 %v270, %v346
      %v348 = vpop.f32.mrb[0].mxu0
      %v349 = vpop.f32.mrb[0].mxu0
      %v350 = vadd.f32 %v273, %v349
      %v351 = vpop.f32.mrb[0].mxu0
      %352 = vmatprep.mubr.bf16.mxu0 0
      %353 = vmatmul.mubr.bf16.gmra.mrb[0].mxu0 %v304
      %v354 = vpop.f32.mrb[0].mxu0
      %v355 = vadd.f32 %v278, %v354
      %v356 = vpop.f32.mrb[0].mxu0
      %v357 = vpop.f32.mrb[0].mxu0
      %v358 = vadd.f32 %v281, %v357
      %v359 = vpop.f32.mrb[0].mxu0
      %360 = vmatprep.mubr.bf16.mxu0 0
      %361 = vmatmul.mubr.bf16.gmra.mrb[0].mxu0 %v307
      %v362 = vpop.f32.mrb[0].mxu0
      %v363 = vadd.f32 %v286, %v362
      %v364 = vpop.f32.mrb[0].mxu0
      %v365 = vpop.f32.mrb[0].mxu0
      %v366 = vadd.f32 %v289, %v365
      %v367 = vpop.f32.mrb[0].mxu0
      %368 = vmatprep.mubr.bf16.mxu0 0
      %369 = vmatmul.mubr.bf16.gmra.mrb[0].mxu0 %v310
      %v370 = vpop.f32.mrb[0].mxu0
      %v371 = vadd.f32 %v294, %v370
      %v372 = vpop.f32.mrb[0].mxu0
      %v373 = vpop.f32.mrb[0].mxu0
      %v374 = vadd.f32 %v297, %v373
      %v375 = vpop.f32.mrb[0].mxu0
      %376 = vdwg.mxu0
      %v378 = vsel %vm222, %v200, 0
      %v381 = vsel %vm222, %v201, 0
      %v384 = vsel %vm222, %v202, 0
      %v387 = vsel %vm222, %v203, 0
      %389 = vmatprep.subr.bf16.mxu0 0
      %390 = vmatpush1.bf16.msra.mxu0 %v221
      %391 = vmatprep.subr.bf16.mxu0 0
      %392 = vmatpush1.bf16.msra.mxu0 0
      %393 = vmatprep.subr.bf16.mxu0 0
      %394 = vmatpush1.bf16.msra.mxu0 0
      %395 = vmatprep.subr.bf16.mxu0 0
      %396 = vmatpush1.bf16.msra.mxu0 0
      %397 = vmatprep.subr.bf16.mxu0 0
      %398 = vmatpush1.bf16.msra.mxu0 0
      %399 = vmatprep.subr.bf16.mxu0 0
      %400 = vmatpush1.bf16.msra.mxu0 0
      %401 = vmatprep.subr.bf16.mxu0 0
      %402 = vmatpush1.bf16.msra.mxu0 0
      %403 = vmatprep.subr.bf16.mxu0 0
      %404 = vmatpush1.bf16.msra.mxu0 0
      %405 = vmatprep.subr.bf16.mxu0 0
      %406 = vmatpush1.bf16.msra.mxu0 0
      %407 = vmatprep.subr.bf16.mxu0 0
      %408 = vmatpush1.bf16.msra.mxu0 0
      %409 = vmatprep.subr.bf16.mxu0 0
      %410 = vmatpush1.bf16.msra.mxu0 0
      %411 = vmatprep.subr.bf16.mxu0 0
      %412 = vmatpush1.bf16.msra.mxu0 0
      %413 = vmatprep.subr.bf16.mxu0 0
      %414 = vmatpush1.bf16.msra.mxu0 0
      %415 = vmatprep.subr.bf16.mxu0 0
      %416 = vmatpush1.bf16.msra.mxu0 0
      %417 = vmatprep.subr.bf16.mxu0 0
      %418 = vmatpush1.bf16.msra.mxu0 0
      %419 = vmatprep.subr.bf16.mxu0 0
      %420 = vmatpush1.bf16.msra.mxu0 0
      %421 = vmatprep.mubr.bf16.mxu0 0
      %422 = vmatmul.mubr.bf16.gmra.mrb[0].mxu0 %v378
      %v423 = vpop.f32.mrb[0].mxu0
      %v424 = vadd.f32 0.0, %v423
      %v425 = vpop.f32.mrb[0].mxu0
      %v426 = vpop.f32.mrb[0].mxu0
      %v427 = vadd.f32 0.0, %v426
      %v428 = vpop.f32.mrb[0].mxu0
      %429 = vmatprep.mubr.bf16.mxu0 0
      %430 = vmatmul.mubr.bf16.gmra.mrb[0].mxu0 %v381
      %v431 = vpop.f32.mrb[0].mxu0
      %v432 = vadd.f32 0.0, %v431
      %v433 = vpop.f32.mrb[0].mxu0
      %v434 = vpop.f32.mrb[0].mxu0
      %v435 = vadd.f32 0.0, %v434
      %v436 = vpop.f32.mrb[0].mxu0
      %437 = vmatprep.mubr.bf16.mxu0 0
      %438 = vmatmul.mubr.bf16.gmra.mrb[0].mxu0 %v384
      %v439 = vpop.f32.mrb[0].mxu0
      %v440 = vadd.f32 0.0, %v439
      %v441 = vpop.f32.mrb[0].mxu0
      %v442 = vpop.f32.mrb[0].mxu0
      %v443 = vadd.f32 0.0, %v442
      %v444 = vpop.f32.mrb[0].mxu0
      %445 = vmatprep.mubr.bf16.mxu0 0
      %446 = vmatmul.mubr.bf16.gmra.mrb[0].mxu0 %v387
      %v447 = vpop.f32.mrb[0].mxu0
      %v448 = vadd.f32 0.0, %v447
      %v449 = vpop.f32.mrb[0].mxu0
      %v450 = vpop.f32.mrb[0].mxu0
      %v451 = vadd.f32 0.0, %v450
      %v452 = vpop.f32.mrb[0].mxu0
      %453 = vdwg.mxu0
      %v454 = vadd.f32 %v347, %v424
      %v455 = vadd.f32 %v350, %v427
      %v456 = vadd.f32 %v355, %v432
      %v457 = vadd.f32 %v358, %v435
      %v458 = vadd.f32 %v363, %v440
      %v459 = vadd.f32 %v366, %v443
      %v460 = vadd.f32 %v371, %v448
      %v461 = vadd.f32 %v374, %v451
      %v470 = vcombine.high %v454, %v454
      %v472 = vunpack.c.l.s4 1966171168
      %v473 = vunpack.c.0.s8 %v472
      %v474 = vlaneseq
      %v475 = vshrl.u32 %v474, 7
      %v476 = vsub.s32 %v473, %v475
      %v477 = vrot.slane %v454, %v476
      %v479 = vunpack.c.l.s4 1966171168
      %v480 = vunpack.c.0.s8 %v479
      %v481 = vlaneseq
      %v482 = vshrl.u32 %v481, 7
      %v483 = vsub.s32 %v480, %v482
      %v484 = vrot.slane %v470, %v483
      %v485 = vcombine.high %v477, %v477
      %v486 = vcombine.high %v484, %v484
      %v488 = vunpack.c.l.s4 1966171168
      %v489 = vunpack.c.0.s8 %v488
      %v490 = vlaneseq
      %v491 = vshrl.u32 %v490, 7
      %v492 = vsub.s32 %v489, %v491
      %v493 = vrot.slane %v477, %v492
      %v495 = vunpack.c.l.s4 1966171168
      %v496 = vunpack.c.0.s8 %v495
      %v497 = vlaneseq
      %v498 = vshrl.u32 %v497, 7
      %v499 = vsub.s32 %v496, %v498
      %v500 = vrot.slane %v484, %v499
      %v502 = vunpack.c.l.s4 1966171168
      %v503 = vunpack.c.0.s8 %v502
      %v504 = vlaneseq
      %v505 = vshrl.u32 %v504, 7
      %v506 = vsub.s32 %v503, %v505
      %v507 = vrot.slane %v485, %v506
      %v509 = vunpack.c.l.s4 1966171168
      %v510 = vunpack.c.0.s8 %v509
      %v511 = vlaneseq
      %v512 = vshrl.u32 %v511, 7
      %v513 = vsub.s32 %v510, %v512
      %v514 = vrot.slane %v486, %v513
      %v515 = vcombine.high %v493, %v493
      %v516 = vcombine.high %v500, %v500
      %v517 = vcombine.high %v507, %v507
      %v518 = vcombine.high %v514, %v514
      %v519 = vcombine.high %v455, %v455
      %v521 = vunpack.c.l.s4 1966171168
      %v522 = vunpack.c.0.s8 %v521
      %v523 = vlaneseq
      %v524 = vshrl.u32 %v523, 7
      %v525 = vsub.s32 %v522, %v524
      %v526 = vrot.slane %v455, %v525
      %v528 = vunpack.c.l.s4 1966171168
      %v529 = vunpack.c.0.s8 %v528
      %v530 = vlaneseq
      %v531 = vshrl.u32 %v530, 7
      %v532 = vsub.s32 %v529, %v531
      %v533 = vrot.slane %v519, %v532
      %v534 = vcombine.high %v526, %v526
      %v535 = vcombine.high %v533, %v533
      %v537 = vunpack.c.l.s4 1966171168
      %v538 = vunpack.c.0.s8 %v537
      %v539 = vlaneseq
      %v540 = vshrl.u32 %v539, 7
      %v541 = vsub.s32 %v538, %v540
      %v542 = vrot.slane %v526, %v541
      %v544 = vunpack.c.l.s4 1966171168
      %v545 = vunpack.c.0.s8 %v544
      %v546 = vlaneseq
      %v547 = vshrl.u32 %v546, 7
      %v548 = vsub.s32 %v545, %v547
      %v549 = vrot.slane %v533, %v548
      %v551 = vunpack.c.l.s4 1966171168
      %v552 = vunpack.c.0.s8 %v551
      %v553 = vlaneseq
      %v554 = vshrl.u32 %v553, 7
      %v555 = vsub.s32 %v552, %v554
      %v556 = vrot.slane %v534, %v555
      %v558 = vunpack.c.l.s4 1966171168
      %v559 = vunpack.c.0.s8 %v558
      %v560 = vlaneseq
      %v561 = vshrl.u32 %v560, 7
      %v562 = vsub.s32 %v559, %v561
      %v563 = vrot.slane %v535, %v562
      %v564 = vcombine.high %v542, %v542
      %v565 = vcombine.high %v549, %v549
      %v566 = vcombine.high %v556, %v556
      %v567 = vcombine.high %v563, %v563
      %v568 = vcombine.high %v456, %v456
      %v570 = vunpack.c.l.s4 1966171168
      %v571 = vunpack.c.0.s8 %v570
      %v572 = vlaneseq
      %v573 = vshrl.u32 %v572, 7
      %v574 = vsub.s32 %v571, %v573
      %v575 = vrot.slane %v456, %v574
      %v577 = vunpack.c.l.s4 1966171168
      %v578 = vunpack.c.0.s8 %v577
      %v579 = vlaneseq
      %v580 = vshrl.u32 %v579, 7
      %v581 = vsub.s32 %v578, %v580
      %v582 = vrot.slane %v568, %v581
      %v583 = vcombine.high %v575, %v575
      %v584 = vcombine.high %v582, %v582
      %v586 = vunpack.c.l.s4 1966171168
      %v587 = vunpack.c.0.s8 %v586
      %v588 = vlaneseq
      %v589 = vshrl.u32 %v588, 7
      %v590 = vsub.s32 %v587, %v589
      %v591 = vrot.slane %v575, %v590
      %v593 = vunpack.c.l.s4 1966171168
      %v594 = vunpack.c.0.s8 %v593
      %v595 = vlaneseq
      %v596 = vshrl.u32 %v595, 7
      %v597 = vsub.s32 %v594, %v596
      %v598 = vrot.slane %v582, %v597
      %v600 = vunpack.c.l.s4 1966171168
      %v601 = vunpack.c.0.s8 %v600
      %v602 = vlaneseq
      %v603 = vshrl.u32 %v602, 7
      %v604 = vsub.s32 %v601, %v603
      %v605 = vrot.slane %v583, %v604
      %v607 = vunpack.c.l.s4 1966171168
      %v608 = vunpack.c.0.s8 %v607
      %v609 = vlaneseq
      %v610 = vshrl.u32 %v609, 7
      %v611 = vsub.s32 %v608, %v610
      %v612 = vrot.slane %v584, %v611
      %v613 = vcombine.high %v591, %v591
      %v614 = vcombine.high %v598, %v598
      %v615 = vcombine.high %v605, %v605
      %v616 = vcombine.high %v612, %v612
      %v617 = vcombine.high %v457, %v457
      %v619 = vunpack.c.l.s4 1966171168
      %v620 = vunpack.c.0.s8 %v619
      %v621 = vlaneseq
      %v622 = vshrl.u32 %v621, 7
      %v623 = vsub.s32 %v620, %v622
      %v624 = vrot.slane %v457, %v623
      %v626 = vunpack.c.l.s4 1966171168
      %v627 = vunpack.c.0.s8 %v626
      %v628 = vlaneseq
      %v629 = vshrl.u32 %v628, 7
      %v630 = vsub.s32 %v627, %v629
      %v631 = vrot.slane %v617, %v630
      %v632 = vcombine.high %v624, %v624
      %v633 = vcombine.high %v631, %v631
      %v635 = vunpack.c.l.s4 1966171168
      %v636 = vunpack.c.0.s8 %v635
      %v637 = vlaneseq
      %v638 = vshrl.u32 %v637, 7
      %v639 = vsub.s32 %v636, %v638
      %v640 = vrot.slane %v624, %v639
      %v642 = vunpack.c.l.s4 1966171168
      %v643 = vunpack.c.0.s8 %v642
      %v644 = vlaneseq
      %v645 = vshrl.u32 %v644, 7
      %v646 = vsub.s32 %v643, %v645
      %v647 = vrot.slane %v631, %v646
      %v649 = vunpack.c.l.s4 1966171168
      %v650 = vunpack.c.0.s8 %v649
      %v651 = vlaneseq
      %v652 = vshrl.u32 %v651, 7
      %v653 = vsub.s32 %v650, %v652
      %v654 = vrot.slane %v632, %v653
      %v656 = vunpack.c.l.s4 1966171168
      %v657 = vunpack.c.0.s8 %v656
      %v658 = vlaneseq
      %v659 = vshrl.u32 %v658, 7
      %v660 = vsub.s32 %v657, %v659
      %v661 = vrot.slane %v633, %v660
      %v662 = vcombine.high %v640, %v640
      %v663 = vcombine.high %v647, %v647
      %v664 = vcombine.high %v654, %v654
      %v665 = vcombine.high %v661, %v661
      %v666 = vcombine.high %v458, %v458
      %v668 = vunpack.c.l.s4 1966171168
      %v669 = vunpack.c.0.s8 %v668
      %v670 = vlaneseq
      %v671 = vshrl.u32 %v670, 7
      %v672 = vsub.s32 %v669, %v671
      %v673 = vrot.slane %v458, %v672
      %v675 = vunpack.c.l.s4 1966171168
      %v676 = vunpack.c.0.s8 %v675
      %v677 = vlaneseq
      %v678 = vshrl.u32 %v677, 7
      %v679 = vsub.s32 %v676, %v678
      %v680 = vrot.slane %v666, %v679
      %v681 = vcombine.high %v673, %v673
      %v682 = vcombine.high %v680, %v680
      %v684 = vunpack.c.l.s4 1966171168
      %v685 = vunpack.c.0.s8 %v684
      %v686 = vlaneseq
      %v687 = vshrl.u32 %v686, 7
      %v688 = vsub.s32 %v685, %v687
      %v689 = vrot.slane %v673, %v688
      %v691 = vunpack.c.l.s4 1966171168
      %v692 = vunpack.c.0.s8 %v691
      %v693 = vlaneseq
      %v694 = vshrl.u32 %v693, 7
      %v695 = vsub.s32 %v692, %v694
      %v696 = vrot.slane %v680, %v695
      %v698 = vunpack.c.l.s4 1966171168
      %v699 = vunpack.c.0.s8 %v698
      %v700 = vlaneseq
      %v701 = vshrl.u32 %v700, 7
      %v702 = vsub.s32 %v699, %v701
      %v703 = vrot.slane %v681, %v702
      %v705 = vunpack.c.l.s4 1966171168
      %v706 = vunpack.c.0.s8 %v705
      %v707 = vlaneseq
      %v708 = vshrl.u32 %v707, 7
      %v709 = vsub.s32 %v706, %v708
      %v710 = vrot.slane %v682, %v709
      %v711 = vcombine.high %v689, %v689
      %v712 = vcombine.high %v696, %v696
      %v713 = vcombine.high %v703, %v703
      %v714 = vcombine.high %v710, %v710
      %v715 = vcombine.high %v459, %v459
      %v717 = vunpack.c.l.s4 1966171168
      %v718 = vunpack.c.0.s8 %v717
      %v719 = vlaneseq
      %v720 = vshrl.u32 %v719, 7
      %v721 = vsub.s32 %v718, %v720
      %v722 = vrot.slane %v459, %v721
      %v724 = vunpack.c.l.s4 1966171168
      %v725 = vunpack.c.0.s8 %v724
      %v726 = vlaneseq
      %v727 = vshrl.u32 %v726, 7
      %v728 = vsub.s32 %v725, %v727
      %v729 = vrot.slane %v715, %v728
      %v730 = vcombine.high %v722, %v722
      %v731 = vcombine.high %v729, %v729
      %v733 = vunpack.c.l.s4 1966171168
      %v734 = vunpack.c.0.s8 %v733
      %v735 = vlaneseq
      %v736 = vshrl.u32 %v735, 7
      %v737 = vsub.s32 %v734, %v736
      %v738 = vrot.slane %v722, %v737
      %v740 = vunpack.c.l.s4 1966171168
      %v741 = vunpack.c.0.s8 %v740
      %v742 = vlaneseq
      %v743 = vshrl.u32 %v742, 7
      %v744 = vsub.s32 %v741, %v743
      %v745 = vrot.slane %v729, %v744
      %v747 = vunpack.c.l.s4 1966171168
      %v748 = vunpack.c.0.s8 %v747
      %v749 = vlaneseq
      %v750 = vshrl.u32 %v749, 7
      %v751 = vsub.s32 %v748, %v750
      %v752 = vrot.slane %v730, %v751
      %v754 = vunpack.c.l.s4 1966171168
      %v755 = vunpack.c.0.s8 %v754
      %v756 = vlaneseq
      %v757 = vshrl.u32 %v756, 7
      %v758 = vsub.s32 %v755, %v757
      %v759 = vrot.slane %v731, %v758
      %v760 = vcombine.high %v738, %v738
      %v761 = vcombine.high %v745, %v745
      %v762 = vcombine.high %v752, %v752
      %v763 = vcombine.high %v759, %v759
      %v764 = vcombine.high %v460, %v460
      %v766 = vunpack.c.l.s4 1966171168
      %v767 = vunpack.c.0.s8 %v766
      %v768 = vlaneseq
      %v769 = vshrl.u32 %v768, 7
      %v770 = vsub.s32 %v767, %v769
      %v771 = vrot.slane %v460, %v770
      %v773 = vunpack.c.l.s4 1966171168
      %v774 = vunpack.c.0.s8 %v773
      %v775 = vlaneseq
      %v776 = vshrl.u32 %v775, 7
      %v777 = vsub.s32 %v774, %v776
      %v778 = vrot.slane %v764, %v777
      %v779 = vcombine.high %v771, %v771
      %v780 = vcombine.high %v778, %v778
      %v782 = vunpack.c.l.s4 1966171168
      %v783 = vunpack.c.0.s8 %v782
      %v784 = vlaneseq
      %v785 = vshrl.u32 %v784, 7
      %v786 = vsub.s32 %v783, %v785
      %v787 = vrot.slane %v771, %v786
      %v789 = vunpack.c.l.s4 1966171168
      %v790 = vunpack.c.0.s8 %v789
      %v791 = vlaneseq
      %v792 = vshrl.u32 %v791, 7
      %v793 = vsub.s32 %v790, %v792
      %v794 = vrot.slane %v778, %v793
      %v796 = vunpack.c.l.s4 1966171168
      %v797 = vunpack.c.0.s8 %v796
      %v798 = vlaneseq
      %v799 = vshrl.u32 %v798, 7
      %v800 = vsub.s32 %v797, %v799
      %v801 = vrot.slane %v779, %v800
      %v803 = vunpack.c.l.s4 1966171168
      %v804 = vunpack.c.0.s8 %v803
      %v805 = vlaneseq
      %v806 = vshrl.u32 %v805, 7
      %v807 = vsub.s32 %v804, %v806
      %v808 = vrot.slane %v780, %v807
      %v809 = vcombine.high %v787, %v787
      %v810 = vcombine.high %v794, %v794
      %v811 = vcombine.high %v801, %v801
      %v812 = vcombine.high %v808, %v808
      %v813 = vcombine.high %v461, %v461
      %v815 = vunpack.c.l.s4 1966171168
      %v816 = vunpack.c.0.s8 %v815
      %v817 = vlaneseq
      %v818 = vshrl.u32 %v817, 7
      %v819 = vsub.s32 %v816, %v818
      %v820 = vrot.slane %v461, %v819
      %v822 = vunpack.c.l.s4 1966171168
      %v823 = vunpack.c.0.s8 %v822
      %v824 = vlaneseq
      %v825 = vshrl.u32 %v824, 7
      %v826 = vsub.s32 %v823, %v825
      %v827 = vrot.slane %v813, %v826
      %v828 = vcombine.high %v820, %v820
      %v829 = vcombine.high %v827, %v827
      %v831 = vunpack.c.l.s4 1966171168
      %v832 = vunpack.c.0.s8 %v831
      %v833 = vlaneseq
      %v834 = vshrl.u32 %v833, 7
      %v835 = vsub.s32 %v832, %v834
      %v836 = vrot.slane %v820, %v835
      %v838 = vunpack.c.l.s4 1966171168
      %v839 = vunpack.c.0.s8 %v838
      %v840 = vlaneseq
      %v841 = vshrl.u32 %v840, 7
      %v842 = vsub.s32 %v839, %v841
      %v843 = vrot.slane %v827, %v842
      %v845 = vunpack.c.l.s4 1966171168
      %v846 = vunpack.c.0.s8 %v845
      %v847 = vlaneseq
      %v848 = vshrl.u32 %v847, 7
      %v849 = vsub.s32 %v846, %v848
      %v850 = vrot.slane %v828, %v849
      %v852 = vunpack.c.l.s4 1966171168
      %v853 = vunpack.c.0.s8 %v852
      %v854 = vlaneseq
      %v855 = vshrl.u32 %v854, 7
      %v856 = vsub.s32 %v853, %v855
      %v857 = vrot.slane %v829, %v856
      %v858 = vcombine.high %v836, %v836
      %v859 = vcombine.high %v843, %v843
      %v860 = vcombine.high %v850, %v850
      %v861 = vcombine.high %v857, %v857
      %v862 = vlaneseq
      %v863 = vshrl.u32 %v862, 7
      %v864 = vsub.s32 0, %v863
      %v865 = vrot.slane %v493, %v864
      %v866 = vlaneseq
      %v867 = vshrl.u32 %v866, 7
      %v868 = vsub.s32 0, %v867
      %v869 = vrot.slane %v507, %v868
      %v870 = vlaneseq
      %v871 = vshrl.u32 %v870, 7
      %v872 = vsub.s32 0, %v871
      %v873 = vrot.slane %v515, %v872
      %v874 = vlaneseq
      %v875 = vshrl.u32 %v874, 7
      %v876 = vsub.s32 0, %v875
      %v877 = vrot.slane %v517, %v876
      %v878 = vlaneseq
      %v879 = vshrl.u32 %v878, 7
      %v880 = vsub.s32 0, %v879
      %v881 = vrot.slane %v500, %v880
      %v882 = vlaneseq
      %v883 = vshrl.u32 %v882, 7
      %v884 = vsub.s32 0, %v883
      %v885 = vrot.slane %v514, %v884
      %v886 = vlaneseq
      %v887 = vshrl.u32 %v886, 7
      %v888 = vsub.s32 0, %v887
      %v889 = vrot.slane %v516, %v888
      %v890 = vlaneseq
      %v891 = vshrl.u32 %v890, 7
      %v892 = vsub.s32 0, %v891
      %v893 = vrot.slane %v518, %v892
      %v894 = vlaneseq
      %v895 = vshrl.u32 %v894, 7
      %v896 = vsub.s32 0, %v895
      %v897 = vrot.slane %v542, %v896
      %v898 = vlaneseq
      %v899 = vshrl.u32 %v898, 7
      %v900 = vsub.s32 0, %v899
      %v901 = vrot.slane %v556, %v900
      %v902 = vlaneseq
      %v903 = vshrl.u32 %v902, 7
      %v904 = vsub.s32 0, %v903
      %v905 = vrot.slane %v564, %v904
      %v906 = vlaneseq
      %v907 = vshrl.u32 %v906, 7
      %v908 = vsub.s32 0, %v907
      %v909 = vrot.slane %v566, %v908
      %v910 = vlaneseq
      %v911 = vshrl.u32 %v910, 7
      %v912 = vsub.s32 0, %v911
      %v913 = vrot.slane %v549, %v912
      %v914 = vlaneseq
      %v915 = vshrl.u32 %v914, 7
      %v916 = vsub.s32 0, %v915
      %v917 = vrot.slane %v563, %v916
      %v918 = vlaneseq
      %v919 = vshrl.u32 %v918, 7
      %v920 = vsub.s32 0, %v919
      %v921 = vrot.slane %v565, %v920
      %v922 = vlaneseq
      %v923 = vshrl.u32 %v922, 7
      %v924 = vsub.s32 0, %v923
      %v925 = vrot.slane %v567, %v924
      %v926 = vlaneseq
      %v927 = vshrl.u32 %v926, 7
      %v928 = vsub.s32 0, %v927
      %v929 = vrot.slane %v591, %v928
      %v930 = vlaneseq
      %v931 = vshrl.u32 %v930, 7
      %v932 = vsub.s32 0, %v931
      %v933 = vrot.slane %v605, %v932
      %v934 = vlaneseq
      %v935 = vshrl.u32 %v934, 7
      %v936 = vsub.s32 0, %v935
      %v937 = vrot.slane %v613, %v936
      %v938 = vlaneseq
      %v939 = vshrl.u32 %v938, 7
      %v940 = vsub.s32 0, %v939
      %v941 = vrot.slane %v615, %v940
      %v942 = vlaneseq
      %v943 = vshrl.u32 %v942, 7
      %v944 = vsub.s32 0, %v943
      %v945 = vrot.slane %v598, %v944
      %v946 = vlaneseq
      %v947 = vshrl.u32 %v946, 7
      %v948 = vsub.s32 0, %v947
      %v949 = vrot.slane %v612, %v948
      %v950 = vlaneseq
      %v951 = vshrl.u32 %v950, 7
      %v952 = vsub.s32 0, %v951
      %v953 = vrot.slane %v614, %v952
      %v954 = vlaneseq
      %v955 = vshrl.u32 %v954, 7
      %v956 = vsub.s32 0, %v955
      %v957 = vrot.slane %v616, %v956
      %v958 = vlaneseq
      %v959 = vshrl.u32 %v958, 7
      %v960 = vsub.s32 0, %v959
      %v961 = vrot.slane %v640, %v960
      %v962 = vlaneseq
      %v963 = vshrl.u32 %v962, 7
      %v964 = vsub.s32 0, %v963
      %v965 = vrot.slane %v654, %v964
      %v966 = vlaneseq
      %v967 = vshrl.u32 %v966, 7
      %v968 = vsub.s32 0, %v967
      %v969 = vrot.slane %v662, %v968
      %v970 = vlaneseq
      %v971 = vshrl.u32 %v970, 7
      %v972 = vsub.s32 0, %v971
      %v973 = vrot.slane %v664, %v972
      %v974 = vlaneseq
      %v975 = vshrl.u32 %v974, 7
      %v976 = vsub.s32 0, %v975
      %v977 = vrot.slane %v647, %v976
      %v978 = vlaneseq
      %v979 = vshrl.u32 %v978, 7
      %v980 = vsub.s32 0, %v979
      %v981 = vrot.slane %v661, %v980
      %v982 = vlaneseq
      %v983 = vshrl.u32 %v982, 7
      %v984 = vsub.s32 0, %v983
      %v985 = vrot.slane %v663, %v984
      %v986 = vlaneseq
      %v987 = vshrl.u32 %v986, 7
      %v988 = vsub.s32 0, %v987
      %v989 = vrot.slane %v665, %v988
      %v990 = vlaneseq
      %v991 = vshrl.u32 %v990, 7
      %v992 = vsub.s32 0, %v991
      %v993 = vrot.slane %v689, %v992
      %v994 = vlaneseq
      %v995 = vshrl.u32 %v994, 7
      %v996 = vsub.s32 0, %v995
      %v997 = vrot.slane %v703, %v996
      %v998 = vlaneseq
      %v999 = vshrl.u32 %v998, 7
      %v1000 = vsub.s32 0, %v999
      %v1001 = vrot.slane %v711, %v1000
      %v1002 = vlaneseq
      %v1003 = vshrl.u32 %v1002, 7
      %v1004 = vsub.s32 0, %v1003
      %v1005 = vrot.slane %v713, %v1004
      %v1006 = vlaneseq
      %v1007 = vshrl.u32 %v1006, 7
      %v1008 = vsub.s32 0, %v1007
      %v1009 = vrot.slane %v696, %v1008
      %v1010 = vlaneseq
      %v1011 = vshrl.u32 %v1010, 7
      %v1012 = vsub.s32 0, %v1011
      %v1013 = vrot.slane %v710, %v1012
      %v1014 = vlaneseq
      %v1015 = vshrl.u32 %v1014, 7
      %v1016 = vsub.s32 0, %v1015
      %v1017 = vrot.slane %v712, %v1016
      %v1018 = vlaneseq
      %v1019 = vshrl.u32 %v1018, 7
      %v1020 = vsub.s32 0, %v1019
      %v1021 = vrot.slane %v714, %v1020
      %v1022 = vlaneseq
      %v1023 = vshrl.u32 %v1022, 7
      %v1024 = vsub.s32 0, %v1023
      %v1025 = vrot.slane %v738, %v1024
      %v1026 = vlaneseq
      %v1027 = vshrl.u32 %v1026, 7
      %v1028 = vsub.s32 0, %v1027
      %v1029 = vrot.slane %v752, %v1028
      %v1030 = vlaneseq
      %v1031 = vshrl.u32 %v1030, 7
      %v1032 = vsub.s32 0, %v1031
      %v1033 = vrot.slane %v760, %v1032
      %v1034 = vlaneseq
      %v1035 = vshrl.u32 %v1034, 7
      %v1036 = vsub.s32 0, %v1035
      %v1037 = vrot.slane %v762, %v1036
      %v1038 = vlaneseq
      %v1039 = vshrl.u32 %v1038, 7
      %v1040 = vsub.s32 0, %v1039
      %v1041 = vrot.slane %v745, %v1040
      %v1042 = vlaneseq
      %v1043 = vshrl.u32 %v1042, 7
      %v1044 = vsub.s32 0, %v1043
      %v1045 = vrot.slane %v759, %v1044
      %v1046 = vlaneseq
      %v1047 = vshrl.u32 %v1046, 7
      %v1048 = vsub.s32 0, %v1047
      %v1049 = vrot.slane %v761, %v1048
      %v1050 = vlaneseq
      %v1051 = vshrl.u32 %v1050, 7
      %v1052 = vsub.s32 0, %v1051
      %v1053 = vrot.slane %v763, %v1052
      %v1054 = vlaneseq
      %v1055 = vshrl.u32 %v1054, 7
      %v1056 = vsub.s32 0, %v1055
      %v1057 = vrot.slane %v787, %v1056
      %v1058 = vlaneseq
      %v1059 = vshrl.u32 %v1058, 7
      %v1060 = vsub.s32 0, %v1059
      %v1061 = vrot.slane %v801, %v1060
      %v1062 = vlaneseq
      %v1063 = vshrl.u32 %v1062, 7
      %v1064 = vsub.s32 0, %v1063
      %v1065 = vrot.slane %v809, %v1064
      %v1066 = vlaneseq
      %v1067 = vshrl.u32 %v1066, 7
      %v1068 = vsub.s32 0, %v1067
      %v1069 = vrot.slane %v811, %v1068
      %v1070 = vlaneseq
      %v1071 = vshrl.u32 %v1070, 7
      %v1072 = vsub.s32 0, %v1071
      %v1073 = vrot.slane %v794, %v1072
      %v1074 = vlaneseq
      %v1075 = vshrl.u32 %v1074, 7
      %v1076 = vsub.s32 0, %v1075
      %v1077 = vrot.slane %v808, %v1076
      %v1078 = vlaneseq
      %v1079 = vshrl.u32 %v1078, 7
      %v1080 = vsub.s32 0, %v1079
      %v1081 = vrot.slane %v810, %v1080
      %v1082 = vlaneseq
      %v1083 = vshrl.u32 %v1082, 7
      %v1084 = vsub.s32 0, %v1083
      %v1085 = vrot.slane %v812, %v1084
      %v1086 = vlaneseq
      %v1087 = vshrl.u32 %v1086, 7
      %v1088 = vsub.s32 0, %v1087
      %v1089 = vrot.slane %v836, %v1088
      %v1090 = vlaneseq
      %v1091 = vshrl.u32 %v1090, 7
      %v1092 = vsub.s32 0, %v1091
      %v1093 = vrot.slane %v850, %v1092
      %v1094 = vlaneseq
      %v1095 = vshrl.u32 %v1094, 7
      %v1096 = vsub.s32 0, %v1095
      %v1097 = vrot.slane %v858, %v1096
      %v1098 = vlaneseq
      %v1099 = vshrl.u32 %v1098, 7
      %v1100 = vsub.s32 0, %v1099
      %v1101 = vrot.slane %v860, %v1100
      %v1102 = vlaneseq
      %v1103 = vshrl.u32 %v1102, 7
      %v1104 = vsub.s32 0, %v1103
      %v1105 = vrot.slane %v843, %v1104
      %v1106 = vlaneseq
      %v1107 = vshrl.u32 %v1106, 7
      %v1108 = vsub.s32 0, %v1107
      %v1109 = vrot.slane %v857, %v1108
      %v1110 = vlaneseq
      %v1111 = vshrl.u32 %v1110, 7
      %v1112 = vsub.s32 0, %v1111
      %v1113 = vrot.slane %v859, %v1112
      %v1114 = vlaneseq
      %v1115 = vshrl.u32 %v1114, 7
      %v1116 = vsub.s32 0, %v1115
      %v1117 = vrot.slane %v861, %v1116
      %vm1182 = vcmask 256000
      %1183 = vst.msk [vmem:[%s149] sm:$0x7] %vm1182, %v865
      %1184 = vst.msk [vmem:[%s149 + $0x4] sm:$0x7] %vm1182, %v869
      %1185 = vst.msk [vmem:[%s149 + $0x8] sm:$0x7] %vm1182, %v873
      %1186 = vst.msk [vmem:[%s149 + $0xc] sm:$0x7] %vm1182, %v877
      %1187 = vst.msk [vmem:[%s149 + $0x10] sm:$0x7] %vm1182, %v881
      %1188 = vst.msk [vmem:[%s149 + $0x14] sm:$0x7] %vm1182, %v885
      %1189 = vst.msk [vmem:[%s149 + $0x18] sm:$0x7] %vm1182, %v889
      %1190 = vst.msk [vmem:[%s149 + $0x1c] sm:$0x7] %vm1182, %v893
      %1191 = vst.msk [vmem:[%s149 + $0x20] sm:$0x7] %vm1182, %v897
      %1192 = vst.msk [vmem:[%s149 + $0x24] sm:$0x7] %vm1182, %v901
      %1193 = vst.msk [vmem:[%s149 + $0x28] sm:$0x7] %vm1182, %v905
      %1194 = vst.msk [vmem:[%s149 + $0x2c] sm:$0x7] %vm1182, %v909
      %1195 = vst.msk [vmem:[%s149 + $0x30] sm:$0x7] %vm1182, %v913
      %1196 = vst.msk [vmem:[%s149 + $0x34] sm:$0x7] %vm1182, %v917
      %1197 = vst.msk [vmem:[%s149 + $0x38] sm:$0x7] %vm1182, %v921
      %1198 = vst.msk [vmem:[%s149 + $0x3c] sm:$0x7] %vm1182, %v925
      %1199 = vst.msk [vmem:[%s149 + $0x40] sm:$0x7] %vm1182, %v929
      %1200 = vst.msk [vmem:[%s149 + $0x44] sm:$0x7] %vm1182, %v933
      %1201 = vst.msk [vmem:[%s149 + $0x48] sm:$0x7] %vm1182, %v937
      %1202 = vst.msk [vmem:[%s149 + $0x4c] sm:$0x7] %vm1182, %v941
      %1203 = vst.msk [vmem:[%s149 + $0x50] sm:$0x7] %vm1182, %v945
      %1204 = vst.msk [vmem:[%s149 + $0x54] sm:$0x7] %vm1182, %v949
      %1205 = vst.msk [vmem:[%s149 + $0x58] sm:$0x7] %vm1182, %v953
      %1206 = vst.msk [vmem:[%s149 + $0x5c] sm:$0x7] %vm1182, %v957
      %1207 = vst.msk [vmem:[%s149 + $0x60] sm:$0x7] %vm1182, %v961
      %1208 = vst.msk [vmem:[%s149 + $0x64] sm:$0x7] %vm1182, %v965
      %1209 = vst.msk [vmem:[%s149 + $0x68] sm:$0x7] %vm1182, %v969
      %1210 = vst.msk [vmem:[%s149 + $0x6c] sm:$0x7] %vm1182, %v973
      %1211 = vst.msk [vmem:[%s149 + $0x70] sm:$0x7] %vm1182, %v977
      %1212 = vst.msk [vmem:[%s149 + $0x74] sm:$0x7] %vm1182, %v981
      %1213 = vst.msk [vmem:[%s149 + $0x78] sm:$0x7] %vm1182, %v985
      %1214 = vst.msk [vmem:[%s149 + $0x7c] sm:$0x7] %vm1182, %v989
      %1215 = vst.msk [vmem:[%s149 + $0x80] sm:$0x7] %vm1182, %v993
      %1216 = vst.msk [vmem:[%s149 + $0x84] sm:$0x7] %vm1182, %v997
      %1217 = vst.msk [vmem:[%s149 + $0x88] sm:$0x7] %vm1182, %v1001
      %1218 = vst.msk [vmem:[%s149 + $0x8c] sm:$0x7] %vm1182, %v1005
      %1219 = vst.msk [vmem:[%s149 + $0x90] sm:$0x7] %vm1182, %v1009
      %1220 = vst.msk [vmem:[%s149 + $0x94] sm:$0x7] %vm1182, %v1013
      %1221 = vst.msk [vmem:[%s149 + $0x98] sm:$0x7] %vm1182, %v1017
      %1222 = vst.msk [vmem:[%s149 + $0x9c] sm:$0x7] %vm1182, %v1021
      %1223 = vst.msk [vmem:[%s149 + $0xa0] sm:$0x7] %vm1182, %v1025
      %1224 = vst.msk [vmem:[%s149 + $0xa4] sm:$0x7] %vm1182, %v1029
      %1225 = vst.msk [vmem:[%s149 + $0xa8] sm:$0x7] %vm1182, %v1033
      %1226 = vst.msk [vmem:[%s149 + $0xac] sm:$0x7] %vm1182, %v1037
      %1227 = vst.msk [vmem:[%s149 + $0xb0] sm:$0x7] %vm1182, %v1041
      %1228 = vst.msk [vmem:[%s149 + $0xb4] sm:$0x7] %vm1182, %v1045
      %1229 = vst.msk [vmem:[%s149 + $0xb8] sm:$0x7] %vm1182, %v1049
      %1230 = vst.msk [vmem:[%s149 + $0xbc] sm:$0x7] %vm1182, %v1053
      %1231 = vst.msk [vmem:[%s149 + $0xc0] sm:$0x7] %vm1182, %v1057
      %1232 = vst.msk [vmem:[%s149 + $0xc4] sm:$0x7] %vm1182, %v1061
      %1233 = vst.msk [vmem:[%s149 + $0xc8] sm:$0x7] %vm1182, %v1065
      %1234 = vst.msk [vmem:[%s149 + $0xcc] sm:$0x7] %vm1182, %v1069
      %1235 = vst.msk [vmem:[%s149 + $0xd0] sm:$0x7] %vm1182, %v1073
      %1236 = vst.msk [vmem:[%s149 + $0xd4] sm:$0x7] %vm1182, %v1077
      %1237 = vst.msk [vmem:[%s149 + $0xd8] sm:$0x7] %vm1182, %v1081
      %1238 = vst.msk [vmem:[%s149 + $0xdc] sm:$0x7] %vm1182, %v1085
      %1239 = vst.msk [vmem:[%s149 + $0xe0] sm:$0x7] %vm1182, %v1089
      %1240 = vst.msk [vmem:[%s149 + $0xe4] sm:$0x7] %vm1182, %v1093
      %1241 = vst.msk [vmem:[%s149 + $0xe8] sm:$0x7] %vm1182, %v1097
      %1242 = vst.msk [vmem:[%s149 + $0xec] sm:$0x7] %vm1182, %v1101
      %1243 = vst.msk [vmem:[%s149 + $0xf0] sm:$0x7] %vm1182, %v1105
      %1244 = vst.msk [vmem:[%s149 + $0xf4] sm:$0x7] %vm1182, %v1109
      %1245 = vst.msk [vmem:[%s149 + $0xf8] sm:$0x7] %vm1182, %v1113
      %1246 = vst.msk [vmem:[%s149 + $0xfc] sm:$0x7] %vm1182, %v1117
      %s1247 = smul.u32 64, %s16
      %p1248 = scmp.lt.s32.totalorder %s1247, 127
      %s1249 = scalar_select %p1248, %s1247, 127
      %p1250 = scmp.lt.s32.totalorder %s17, 0
      %s1251 = scalar_select %p1250, %s17, 0
      %s1252 = sadd.s32 %s1251, %s1249
      %s1253 = smul.addr %s1252, 4
      %s1254 = scalar_lea.vmem %s1, %s1253
      // Predicated region
      $region25: #{tpu_custom_call.1} parent=23 // pred_check
        %p1255 = pneg %p72
      $region26: #{tpu_custom_call.1} parent=23 // pred_check_branch
        %1257 = sbr.rel (%p1255) target = $region28
      $region27: #{tpu_custom_call.1} parent=23 // pred_region
        %s1258 = smul.u32 64, %s16
      $region28: #{tpu_custom_call.1} parent=23 // pred_fallthru
        _
    $region24: #{tpu_custom_call.1} parent=5 // pred_fallthru
      _
    %p1259 = scmp.le.s32.totalorder 2, %s7
    // Predicated region
    $region29: #{tpu_custom_call.1} parent=5 // pred_check
      %p1260 = pneg %p1259
    $region30: #{tpu_custom_call.1} parent=5 // pred_check_branch
      %1262 = sbr.rel (%p1260) target = $region32
    $region31: #{tpu_custom_call.1} parent=5 // pred_region
      %s1263 = ssub.s32 %s7, 2
      // Predicated region
      $region33: #{tpu_custom_call.1} parent=31 // pred_check
        %p1264 = pneg %p78
      $region34: #{tpu_custom_call.1} parent=31 // pred_check_branch
        %1266 = sbr.rel (%p1264) target = $region36
      $region35: #{tpu_custom_call.1} parent=31 // pred_region
        %s1267 = smul.u32 64, %s18
        %p1268 = scmp.lt.s32.totalorder %s1267, 127
        %s1269 = scalar_select %p1268, %s1267, 127
        %p1270 = scmp.lt.s32.totalorder %s19, 0
        %s1271 = scalar_select %p1270, %s19, 0
        %s1272 = sadd.s32 %s1271, %s1269
        %s1273 = smul.addr %s1272, 4
        %s1274 = scalar_lea.vmem %s1, %s1273
      $region36: #{tpu_custom_call.1} parent=31 // pred_fallthru
        _
    $region32: #{tpu_custom_call.1} parent=5 // pred_fallthru
      _
  $region6: #{tpu_custom_call.1} parent=0 // loop_footer
    %s11 = sadd.s32 1, %s7
  $region7: #{tpu_custom_call.1} parent=0 // loop_footer_branch
    %6 = sbr.rel target = $region3
  $region8: #{tpu_custom_call.1} parent=0 // loop_exit
    _

</llo_original>
